<compile_context>
chip_gen: v6e
topology: v6e:2x2x1
jax: 0.10.0
libtpu: 0.0.40
codegen_flags: <defaults>
</compile_context>

<pallas_src>
import math
import jax
import jax.numpy as jnp
from jax.experimental import pallas as pl
from jax.experimental.pallas import tpu as pltpu


def _round_up(x, m):
    return (x + m - 1) // m * m


def gru_cell_kernel(tok_ref,      # (B_pad,) int32, SMEM (scalar prefetch)
                    emb_hbm,      # (V, E) f32, HBM ref (memory_space=pl.ANY)
                    h_ref,        # (bm, H) f32, VMEM
                    wi_ref,       # (E, 3H) bf16, VMEM  (W_ih^T)
                    wh_ref,       # (H, 3H) bf16, VMEM  (W_hh^T)
                    bih_ref,      # (1, 3H) f32, VMEM
                    bhh_ref,      # (1, 3H) f32, VMEM
                    h_new_ref,    # (bm, H) f32, VMEM (output)
                    x_buf,        # (bm, E) f32, VMEM scratch (gathered embedding rows)
                    sem):         # (bm,) DMA semaphores
    block_b, H = h_ref.shape
    base = pl.program_id(0) * block_b

    # Fused embedding gather: one row-DMA per token id, straight HBM -> VMEM,
    # overlapped with the prologue weight DMAs (no separate XLA gather launch).
    copies = []
    for j in range(block_b):                               # static unroll; block_b <= 128
        idx = tok_ref[base + j]
        cp = pltpu.make_async_copy(emb_hbm.at[pl.ds(idx, 1), :],
                                   x_buf.at[pl.ds(j, 1), :],
                                   sem.at[j])
        cp.start()
        copies.append(cp)
    for cp in copies:
        cp.wait()

    x = x_buf[...].astype(wi_ref.dtype)                    # (bm, E) bf16
    h = h_ref[...]                                         # (bm, H) f32

    # De-fused matmuls: no zero-padded weight blocks, no packing scratch.
    gi = jnp.dot(x, wi_ref[...], preferred_element_type=jnp.float32) + bih_ref[...]
    gh = jnp.dot(h.astype(wh_ref.dtype), wh_ref[...],
                 preferred_element_type=jnp.float32) + bhh_ref[...]

    r = jax.nn.sigmoid(gi[:, 0:H] + gh[:, 0:H])            # reset gate
    z = jax.nn.sigmoid(gi[:, H:2 * H] + gh[:, H:2 * H])    # update gate
    n = jnp.tanh(gi[:, 2 * H:] + r * gh[:, 2 * H:])        # candidate state
    h_new_ref[...] = ((1.0 - z) * n + z * h).astype(h_new_ref.dtype)


def gru_cell_pallas(token, embedding, h, wi_t, wh_t, b_ih, b_hh, *, block_b=None):
    """token:(B,) int, embedding:(V,E) f32, h:(B,H) f32, wi_t:(E,3H) bf16,
    wh_t:(H,3H) bf16, b_ih/b_hh:(1,3H) f32  ->  (B,H) f32."""
    B = token.shape[0]
    V, E = embedding.shape
    H = h.shape[-1]
    assert wi_t.shape == (E, 3 * H) and wh_t.shape == (H, 3 * H)

    if block_b is None:
        if B >= 64:
            # >= 2 batch blocks so the "parallel" axis spans v7x's two TensorCores;
            # capped at 128 to keep f32 gate intermediates near the 64-vreg budget
            # (also v5e's 128-row MXU M-tile).
            block_b = min(128, _round_up(pl.cdiv(B, 2), 8))
        else:
            block_b = _round_up(B, 8)

    # Pad batch to a multiple of block_b (itself a multiple of 8 sublanes) so the
    # kernel sees full unmasked tiles; padded rows gather token 0 and are dropped.
    B_pad = _round_up(B, block_b)
    token = token.astype(jnp.int32)
    if B_pad != B:
        token = jnp.pad(token, (0, B_pad - B))
        h = jnp.pad(h, ((0, B_pad - B), (0, 0)))

    grid = (B_pad // block_b,)

    out = pl.pallas_call(
        gru_cell_kernel,
        out_shape=jax.ShapeDtypeStruct((B_pad, H), jnp.float32),
        grid_spec=pltpu.PrefetchScalarGridSpec(
            num_scalar_prefetch=1,                              # token ids -> SMEM
            grid=grid,
            in_specs=[
                pl.BlockSpec(memory_space=pl.ANY),              # embedding stays in HBM
                pl.BlockSpec((block_b, H), lambda i, tok: (i, 0)),
                pl.BlockSpec((E, 3 * H), lambda i, tok: (0, 0)),  # resident across grid
                pl.BlockSpec((H, 3 * H), lambda i, tok: (0, 0)),
                pl.BlockSpec((1, 3 * H), lambda i, tok: (0, 0)),
                pl.BlockSpec((1, 3 * H), lambda i, tok: (0, 0)),
            ],
            out_specs=pl.BlockSpec((block_b, H), lambda i, tok: (i, 0)),
            scratch_shapes=[
                pltpu.VMEM((block_b, E), jnp.float32),          # gathered x rows
                pltpu.SemaphoreType.DMA((block_b,)),
            ]),
        compiler_params=pltpu.CompilerParams(
            dimension_semantics=("parallel",)),                 # batch blocks shard on v7x
    )(token, embedding, h, wi_t, wh_t, b_ih, b_hh)
    return out[:B]


def init_params(key, vocab_size, embedding_size, hidden_size):
    """Deterministic init mirroring the PyTorch module's parameter shapes (f32)."""
    k_emb, k_wih, k_whh, k_bih, k_bhh = jax.random.split(key, 5)
    stdv = 1.0 / math.sqrt(hidden_size)
    return {
        "embedding": jax.random.uniform(
            k_emb, (vocab_size, embedding_size), jnp.float32, -0.1, 0.1),
        "w_ih": jax.random.uniform(
            k_wih, (3 * hidden_size, embedding_size), jnp.float32, -stdv, stdv),
        "w_hh": jax.random.uniform(
            k_whh, (3 * hidden_size, hidden_size), jnp.float32, -stdv, stdv),
        "b_ih": jax.random.uniform(
            k_bih, (3 * hidden_size,), jnp.float32, -stdv, stdv),
        "b_hh": jax.random.uniform(
            k_bhh, (3 * hidden_size,), jnp.float32, -stdv, stdv),
    }
    # Note: self.out (Linear) is never used in forward(), so it is not materialized.


def prepare_gru_weights(params, matmul_dtype=jnp.bfloat16):
    """One-time weight prep: pre-transpose to (K, 3H) and cast matmul operands to
    bf16; biases stay f32 (added post f32 accumulation). No zero padding."""
    wi_t = params["w_ih"].T.astype(matmul_dtype)                 # (E, 3H)
    wh_t = params["w_hh"].T.astype(matmul_dtype)                 # (H, 3H)
    b_ih = params["b_ih"].reshape(1, -1).astype(jnp.float32)     # (1, 3H)
    b_hh = params["b_hh"].reshape(1, -1).astype(jnp.float32)     # (1, 3H)
    return wi_t, wh_t, b_ih, b_hh


def gru_forward(params, prepped, token, hidden):
    """Mirrors GRU.forward(token, hidden): token:(B,) int, hidden:(1,B,H) f32
    -> (output (1,B,H), hidden (1,B,H)). Embedding gather happens inside the kernel."""
    wi_t, wh_t, b_ih, b_hh = prepped
    h0 = hidden[0]                                               # (B, H)
    h_new = gru_cell_pallas(token, params["embedding"], h0, wi_t, wh_t, b_ih, b_hh)
    return h_new[None, :, :], h_new[None, :, :]


def gru_forward_ref(params, token, hidden, embedding_size):
    """Pure-JAX f32 reference for correctness checking."""
    H = hidden.shape[-1]
    x = jnp.take(params["embedding"], token, axis=0).reshape(-1, embedding_size)
    h = hidden[0]
    gi = x @ params["w_ih"].T + params["b_ih"]
    gh = h @ params["w_hh"].T + params["b_hh"]
    r = jax.nn.sigmoid(gi[:, :H] + gh[:, :H])
    z = jax.nn.sigmoid(gi[:, H:2 * H] + gh[:, H:2 * H])
    n = jnp.tanh(gi[:, 2 * H:] + r * gh[:, 2 * H:])
    h_new = (1.0 - z) * n + z * h
    return h_new[None], h_new[None]


if __name__ == "__main__":
    # Small shapes consistent with the module (seq=1 implied by forward()).
    batch_size = 8
    hidden_size = 128
    embedding_size = 128
    vocab_size = 1000

    key = jax.random.PRNGKey(0)
    k_params, k_tok, k_hid = jax.random.split(key, 3)
    params = init_params(k_params, vocab_size, embedding_size, hidden_size)
    prepped = prepare_gru_weights(params)        # one-time weight prep (not per call)

    token = jax.random.randint(k_tok, (batch_size,), 0, vocab_size, dtype=jnp.int32)

    # Case 1: zero hidden state (initHidden()).
    hidden0 = jnp.zeros((1, batch_size, hidden_size), jnp.float32)
    out0, hid0 = gru_forward(params, prepped, token, hidden0)
    out0 = jax.block_until_ready(out0)
    hid0 = jax.block_until_ready(hid0)
    out0_ref, hid0_ref = gru_forward_ref(params, token, hidden0, embedding_size)

    # Case 2: random nonzero hidden state (exercises the h-path too).
    hidden1 = 0.5 * jax.random.normal(k_hid, (1, batch_size, hidden_size), jnp.float32)
    out1, hid1 = gru_forward(params, prepped, token, hidden1)
    out1 = jax.block_until_ready(out1)
    hid1 = jax.block_until_ready(hid1)
    out1_ref, hid1_ref = gru_forward_ref(params, token, hidden1, embedding_size)

    assert out0.shape == (1, batch_size, hidden_size)
    assert hid0.shape == (1, batch_size, hidden_size)
    # bf16 matmul operands with f32 accumulation -> tolerance loosened vs pure f32.
    assert jnp.allclose(out0, out0_ref, atol=1e-2, rtol=1e-2)
    assert jnp.allclose(hid0, hid0_ref, atol=1e-2, rtol=1e-2)
    assert jnp.allclose(out1, out1_ref, atol=1e-2, rtol=1e-2)
    assert jnp.allclose(hid1, hid1_ref, atol=1e-2, rtol=1e-2)

    print("KERNEL_OK")
</pallas_src>

<mosaic_0001>
module attributes {stable_mosaic.version = 11 : i64} {
  func.func @gru_cell_kernel(%arg0: i32, %arg1: memref<8xi32, #tpu.memory_space<smem>>, %arg2: memref<1000x128xf32, #tpu.memory_space<any>>, %arg3: memref<8x128xf32, #tpu.memory_space<vmem>>, %arg4: memref<128x384xbf16, #tpu.memory_space<vmem>>, %arg5: memref<128x384xbf16, #tpu.memory_space<vmem>>, %arg6: memref<1x384xf32, #tpu.memory_space<vmem>>, %arg7: memref<1x384xf32, #tpu.memory_space<vmem>>, %arg8: memref<8x128xf32, #tpu.memory_space<vmem>>, %arg9: memref<8x128xf32, #tpu.memory_space<vmem>>, %arg10: memref<8x!tpu.dma_semaphore, #tpu.memory_space<semaphore_mem>>) attributes {dimension_semantics = [#tpu.dimension_semantics<parallel>], iteration_bounds = array<i64: 1>, scalar_prefetch = 1 : i64, scratch_operands = 2 : i64, tpu.core_type = #tpu.core_type<tc>, window_params = [{}, {transform_indices = @transform_1, window_bounds = array<i64: 8, 128>}, {pipeline_mode = #tpu.pipeline_mode<synchronous>, transform_indices = @transform_2, window_bounds = array<i64: 128, 384>}, {pipeline_mode = #tpu.pipeline_mode<synchronous>, transform_indices = @transform_3, window_bounds = array<i64: 128, 384>}, {pipeline_mode = #tpu.pipeline_mode<synchronous>, transform_indices = @transform_4, window_bounds = array<i64: 1, 384>}, {pipeline_mode = #tpu.pipeline_mode<synchronous>, transform_indices = @transform_5, window_bounds = array<i64: 1, 384>}, {transform_indices = @transform_6, window_bounds = array<i64: 8, 128>}]} {
    %c8_i32 = arith.constant 8 : i32
    %0 = arith.muli %arg0, %c8_i32 : i32
    %c0_i32 = arith.constant 0 : i32
    %1 = arith.addi %0, %c0_i32 : i32
    %2 = arith.index_cast %1 : i32 to index
    %3 = memref.load %arg1[%2] : memref<8xi32, #tpu.memory_space<smem>>
    %c0_i32_0 = arith.constant 0 : i32
    %c0_i32_1 = arith.constant 0 : i32
    %4 = tpu.memref_slice %arg2[%3, %c0_i32_1] : memref<1000x128xf32, #tpu.memory_space<any>> -> memref<1x128xf32, #tpu.memory_space<any>>
    %c0_i32_2 = arith.constant 0 : i32
    %c0_i32_3 = arith.constant 0 : i32
    %5 = tpu.memref_slice %arg9[%c0_i32_2, %c0_i32_3] : memref<8x128xf32, #tpu.memory_space<vmem>> -> memref<1x128xf32, #tpu.memory_space<vmem>>
    %6 = tpu.memref_slice %arg10[%c0_i32_0] : memref<8x!tpu.dma_semaphore, #tpu.memory_space<semaphore_mem>> -> memref<1x!tpu.dma_semaphore, #tpu.memory_space<semaphore_mem>>
    %7 = tpu.memref_squeeze %6 : memref<1x!tpu.dma_semaphore, #tpu.memory_space<semaphore_mem>> -> memref<!tpu.dma_semaphore, #tpu.memory_space<semaphore_mem>>
    tpu.enqueue_dma source(%4 : memref<1x128xf32, #tpu.memory_space<any>>) target(%5 : memref<1x128xf32, #tpu.memory_space<vmem>>) target_semaphore(%7 : memref<!tpu.dma_semaphore, #tpu.memory_space<semaphore_mem>>)
    %c1_i32 = arith.constant 1 : i32
    %8 = arith.addi %0, %c1_i32 : i32
    %9 = arith.index_cast %8 : i32 to index
    %10 = memref.load %arg1[%9] : memref<8xi32, #tpu.memory_space<smem>>
    %c1_i32_4 = arith.constant 1 : i32
    %c0_i32_5 = arith.constant 0 : i32
    %11 = tpu.memref_slice %arg2[%10, %c0_i32_5] : memref<1000x128xf32, #tpu.memory_space<any>> -> memref<1x128xf32, #tpu.memory_space<any>>
    %c1_i32_6 = arith.constant 1 : i32
    %c0_i32_7 = arith.constant 0 : i32
    %12 = tpu.memref_slice %arg9[%c1_i32_6, %c0_i32_7] : memref<8x128xf32, #tpu.memory_space<vmem>> -> memref<1x128xf32, #tpu.memory_space<vmem>>
    %13 = tpu.memref_slice %arg10[%c1_i32_4] : memref<8x!tpu.dma_semaphore, #tpu.memory_space<semaphore_mem>> -> memref<1x!tpu.dma_semaphore, #tpu.memory_space<semaphore_mem>>
    %14 = tpu.memref_squeeze %13 : memref<1x!tpu.dma_semaphore, #tpu.memory_space<semaphore_mem>> -> memref<!tpu.dma_semaphore, #tpu.memory_space<semaphore_mem>>
    tpu.enqueue_dma source(%11 : memref<1x128xf32, #tpu.memory_space<any>>) target(%12 : memref<1x128xf32, #tpu.memory_space<vmem>>) target_semaphore(%14 : memref<!tpu.dma_semaphore, #tpu.memory_space<semaphore_mem>>)
    %c2_i32 = arith.constant 2 : i32
    %15 = arith.addi %0, %c2_i32 : i32
    %16 = arith.index_cast %15 : i32 to index
    %17 = memref.load %arg1[%16] : memref<8xi32, #tpu.memory_space<smem>>
    %c2_i32_8 = arith.constant 2 : i32
    %c0_i32_9 = arith.constant 0 : i32
    %18 = tpu.memref_slice %arg2[%17, %c0_i32_9] : memref<1000x128xf32, #tpu.memory_space<any>> -> memref<1x128xf32, #tpu.memory_space<any>>
    %c2_i32_10 = arith.constant 2 : i32
    %c0_i32_11 = arith.constant 0 : i32
    %19 = tpu.memref_slice %arg9[%c2_i32_10, %c0_i32_11] : memref<8x128xf32, #tpu.memory_space<vmem>> -> memref<1x128xf32, #tpu.memory_space<vmem>>
    %20 = tpu.memref_slice %arg10[%c2_i32_8] : memref<8x!tpu.dma_semaphore, #tpu.memory_space<semaphore_mem>> -> memref<1x!tpu.dma_semaphore, #tpu.memory_space<semaphore_mem>>
    %21 = tpu.memref_squeeze %20 : memref<1x!tpu.dma_semaphore, #tpu.memory_space<semaphore_mem>> -> memref<!tpu.dma_semaphore, #tpu.memory_space<semaphore_mem>>
    tpu.enqueue_dma source(%18 : memref<1x128xf32, #tpu.memory_space<any>>) target(%19 : memref<1x128xf32, #tpu.memory_space<vmem>>) target_semaphore(%21 : memref<!tpu.dma_semaphore, #tpu.memory_space<semaphore_mem>>)
    %c3_i32 = arith.constant 3 : i32
    %22 = arith.addi %0, %c3_i32 : i32
    %23 = arith.index_cast %22 : i32 to index
    %24 = memref.load %arg1[%23] : memref<8xi32, #tpu.memory_space<smem>>
    %c3_i32_12 = arith.constant 3 : i32
    %c0_i32_13 = arith.constant 0 : i32
    %25 = tpu.memref_slice %arg2[%24, %c0_i32_13] : memref<1000x128xf32, #tpu.memory_space<any>> -> memref<1x128xf32, #tpu.memory_space<any>>
    %c3_i32_14 = arith.constant 3 : i32
    %c0_i32_15 = arith.constant 0 : i32
    %26 = tpu.memref_slice %arg9[%c3_i32_14, %c0_i32_15] : memref<8x128xf32, #tpu.memory_space<vmem>> -> memref<1x128xf32, #tpu.memory_space<vmem>>
    %27 = tpu.memref_slice %arg10[%c3_i32_12] : memref<8x!tpu.dma_semaphore, #tpu.memory_space<semaphore_mem>> -> memref<1x!tpu.dma_semaphore, #tpu.memory_space<semaphore_mem>>
    %28 = tpu.memref_squeeze %27 : memref<1x!tpu.dma_semaphore, #tpu.memory_space<semaphore_mem>> -> memref<!tpu.dma_semaphore, #tpu.memory_space<semaphore_mem>>
    tpu.enqueue_dma source(%25 : memref<1x128xf32, #tpu.memory_space<any>>) target(%26 : memref<1x128xf32, #tpu.memory_space<vmem>>) target_semaphore(%28 : memref<!tpu.dma_semaphore, #tpu.memory_space<semaphore_mem>>)
    %c4_i32 = arith.constant 4 : i32
    %29 = arith.addi %0, %c4_i32 : i32
    %30 = arith.index_cast %29 : i32 to index
    %31 = memref.load %arg1[%30] : memref<8xi32, #tpu.memory_space<smem>>
    %c4_i32_16 = arith.constant 4 : i32
    %c0_i32_17 = arith.constant 0 : i32
    %32 = tpu.memref_slice %arg2[%31, %c0_i32_17] : memref<1000x128xf32, #tpu.memory_space<any>> -> memref<1x128xf32, #tpu.memory_space<any>>
    %c4_i32_18 = arith.constant 4 : i32
    %c0_i32_19 = arith.constant 0 : i32
    %33 = tpu.memref_slice %arg9[%c4_i32_18, %c0_i32_19] : memref<8x128xf32, #tpu.memory_space<vmem>> -> memref<1x128xf32, #tpu.memory_space<vmem>>
    %34 = tpu.memref_slice %arg10[%c4_i32_16] : memref<8x!tpu.dma_semaphore, #tpu.memory_space<semaphore_mem>> -> memref<1x!tpu.dma_semaphore, #tpu.memory_space<semaphore_mem>>
    %35 = tpu.memref_squeeze %34 : memref<1x!tpu.dma_semaphore, #tpu.memory_space<semaphore_mem>> -> memref<!tpu.dma_semaphore, #tpu.memory_space<semaphore_mem>>
    tpu.enqueue_dma source(%32 : memref<1x128xf32, #tpu.memory_space<any>>) target(%33 : memref<1x128xf32, #tpu.memory_space<vmem>>) target_semaphore(%35 : memref<!tpu.dma_semaphore, #tpu.memory_space<semaphore_mem>>)
    %c5_i32 = arith.constant 5 : i32
    %36 = arith.addi %0, %c5_i32 : i32
    %37 = arith.index_cast %36 : i32 to index
    %38 = memref.load %arg1[%37] : memref<8xi32, #tpu.memory_space<smem>>
    %c5_i32_20 = arith.constant 5 : i32
    %c0_i32_21 = arith.constant 0 : i32
    %39 = tpu.memref_slice %arg2[%38, %c0_i32_21] : memref<1000x128xf32, #tpu.memory_space<any>> -> memref<1x128xf32, #tpu.memory_space<any>>
    %c5_i32_22 = arith.constant 5 : i32
    %c0_i32_23 = arith.constant 0 : i32
    %40 = tpu.memref_slice %arg9[%c5_i32_22, %c0_i32_23] : memref<8x128xf32, #tpu.memory_space<vmem>> -> memref<1x128xf32, #tpu.memory_space<vmem>>
    %41 = tpu.memref_slice %arg10[%c5_i32_20] : memref<8x!tpu.dma_semaphore, #tpu.memory_space<semaphore_mem>> -> memref<1x!tpu.dma_semaphore, #tpu.memory_space<semaphore_mem>>
    %42 = tpu.memref_squeeze %41 : memref<1x!tpu.dma_semaphore, #tpu.memory_space<semaphore_mem>> -> memref<!tpu.dma_semaphore, #tpu.memory_space<semaphore_mem>>
    tpu.enqueue_dma source(%39 : memref<1x128xf32, #tpu.memory_space<any>>) target(%40 : memref<1x128xf32, #tpu.memory_space<vmem>>) target_semaphore(%42 : memref<!tpu.dma_semaphore, #tpu.memory_space<semaphore_mem>>)
    %c6_i32 = arith.constant 6 : i32
    %43 = arith.addi %0, %c6_i32 : i32
    %44 = arith.index_cast %43 : i32 to index
    %45 = memref.load %arg1[%44] : memref<8xi32, #tpu.memory_space<smem>>
    %c6_i32_24 = arith.constant 6 : i32
    %c0_i32_25 = arith.constant 0 : i32
    %46 = tpu.memref_slice %arg2[%45, %c0_i32_25] : memref<1000x128xf32, #tpu.memory_space<any>> -> memref<1x128xf32, #tpu.memory_space<any>>
    %c6_i32_26 = arith.constant 6 : i32
    %c0_i32_27 = arith.constant 0 : i32
    %47 = tpu.memref_slice %arg9[%c6_i32_26, %c0_i32_27] : memref<8x128xf32, #tpu.memory_space<vmem>> -> memref<1x128xf32, #tpu.memory_space<vmem>>
    %48 = tpu.memref_slice %arg10[%c6_i32_24] : memref<8x!tpu.dma_semaphore, #tpu.memory_space<semaphore_mem>> -> memref<1x!tpu.dma_semaphore, #tpu.memory_space<semaphore_mem>>
    %49 = tpu.memref_squeeze %48 : memref<1x!tpu.dma_semaphore, #tpu.memory_space<semaphore_mem>> -> memref<!tpu.dma_semaphore, #tpu.memory_space<semaphore_mem>>
    tpu.enqueue_dma source(%46 : memref<1x128xf32, #tpu.memory_space<any>>) target(%47 : memref<1x128xf32, #tpu.memory_space<vmem>>) target_semaphore(%49 : memref<!tpu.dma_semaphore, #tpu.memory_space<semaphore_mem>>)
    %c7_i32 = arith.constant 7 : i32
    %50 = arith.addi %0, %c7_i32 : i32
    %51 = arith.index_cast %50 : i32 to index
    %52 = memref.load %arg1[%51] : memref<8xi32, #tpu.memory_space<smem>>
    %c7_i32_28 = arith.constant 7 : i32
    %c0_i32_29 = arith.constant 0 : i32
    %53 = tpu.memref_slice %arg2[%52, %c0_i32_29] : memref<1000x128xf32, #tpu.memory_space<any>> -> memref<1x128xf32, #tpu.memory_space<any>>
    %c7_i32_30 = arith.constant 7 : i32
    %c0_i32_31 = arith.constant 0 : i32
    %54 = tpu.memref_slice %arg9[%c7_i32_30, %c0_i32_31] : memref<8x128xf32, #tpu.memory_space<vmem>> -> memref<1x128xf32, #tpu.memory_space<vmem>>
    %55 = tpu.memref_slice %arg10[%c7_i32_28] : memref<8x!tpu.dma_semaphore, #tpu.memory_space<semaphore_mem>> -> memref<1x!tpu.dma_semaphore, #tpu.memory_space<semaphore_mem>>
    %56 = tpu.memref_squeeze %55 : memref<1x!tpu.dma_semaphore, #tpu.memory_space<semaphore_mem>> -> memref<!tpu.dma_semaphore, #tpu.memory_space<semaphore_mem>>
    tpu.enqueue_dma source(%53 : memref<1x128xf32, #tpu.memory_space<any>>) target(%54 : memref<1x128xf32, #tpu.memory_space<vmem>>) target_semaphore(%56 : memref<!tpu.dma_semaphore, #tpu.memory_space<semaphore_mem>>)
    %c0_i32_32 = arith.constant 0 : i32
    %c0_i32_33 = arith.constant 0 : i32
    %57 = tpu.memref_slice %arg2[%3, %c0_i32_33] : memref<1000x128xf32, #tpu.memory_space<any>> -> memref<1x128xf32, #tpu.memory_space<any>>
    %c0_i32_34 = arith.constant 0 : i32
    %c0_i32_35 = arith.constant 0 : i32
    %58 = tpu.memref_slice %arg9[%c0_i32_34, %c0_i32_35] : memref<8x128xf32, #tpu.memory_space<vmem>> -> memref<1x128xf32, #tpu.memory_space<vmem>>
    %59 = tpu.memref_slice %arg10[%c0_i32_32] : memref<8x!tpu.dma_semaphore, #tpu.memory_space<semaphore_mem>> -> memref<1x!tpu.dma_semaphore, #tpu.memory_space<semaphore_mem>>
    %60 = tpu.memref_squeeze %59 : memref<1x!tpu.dma_semaphore, #tpu.memory_space<semaphore_mem>> -> memref<!tpu.dma_semaphore, #tpu.memory_space<semaphore_mem>>
    tpu.wait_dma2 semaphore(%60 : memref<!tpu.dma_semaphore, #tpu.memory_space<semaphore_mem>>) src(%57 : memref<1x128xf32, #tpu.memory_space<any>>) dst(%58 : memref<1x128xf32, #tpu.memory_space<vmem>>)
    %c1_i32_36 = arith.constant 1 : i32
    %c0_i32_37 = arith.constant 0 : i32
    %61 = tpu.memref_slice %arg2[%10, %c0_i32_37] : memref<1000x128xf32, #tpu.memory_space<any>> -> memref<1x128xf32, #tpu.memory_space<any>>
    %c1_i32_38 = arith.constant 1 : i32
    %c0_i32_39 = arith.constant 0 : i32
    %62 = tpu.memref_slice %arg9[%c1_i32_38, %c0_i32_39] : memref<8x128xf32, #tpu.memory_space<vmem>> -> memref<1x128xf32, #tpu.memory_space<vmem>>
    %63 = tpu.memref_slice %arg10[%c1_i32_36] : memref<8x!tpu.dma_semaphore, #tpu.memory_space<semaphore_mem>> -> memref<1x!tpu.dma_semaphore, #tpu.memory_space<semaphore_mem>>
    %64 = tpu.memref_squeeze %63 : memref<1x!tpu.dma_semaphore, #tpu.memory_space<semaphore_mem>> -> memref<!tpu.dma_semaphore, #tpu.memory_space<semaphore_mem>>
    tpu.wait_dma2 semaphore(%64 : memref<!tpu.dma_semaphore, #tpu.memory_space<semaphore_mem>>) src(%61 : memref<1x128xf32, #tpu.memory_space<any>>) dst(%62 : memref<1x128xf32, #tpu.memory_space<vmem>>)
    %c2_i32_40 = arith.constant 2 : i32
    %c0_i32_41 = arith.constant 0 : i32
    %65 = tpu.memref_slice %arg2[%17, %c0_i32_41] : memref<1000x128xf32, #tpu.memory_space<any>> -> memref<1x128xf32, #tpu.memory_space<any>>
    %c2_i32_42 = arith.constant 2 : i32
    %c0_i32_43 = arith.constant 0 : i32
    %66 = tpu.memref_slice %arg9[%c2_i32_42, %c0_i32_43] : memref<8x128xf32, #tpu.memory_space<vmem>> -> memref<1x128xf32, #tpu.memory_space<vmem>>
    %67 = tpu.memref_slice %arg10[%c2_i32_40] : memref<8x!tpu.dma_semaphore, #tpu.memory_space<semaphore_mem>> -> memref<1x!tpu.dma_semaphore, #tpu.memory_space<semaphore_mem>>
    %68 = tpu.memref_squeeze %67 : memref<1x!tpu.dma_semaphore, #tpu.memory_space<semaphore_mem>> -> memref<!tpu.dma_semaphore, #tpu.memory_space<semaphore_mem>>
    tpu.wait_dma2 semaphore(%68 : memref<!tpu.dma_semaphore, #tpu.memory_space<semaphore_mem>>) src(%65 : memref<1x128xf32, #tpu.memory_space<any>>) dst(%66 : memref<1x128xf32, #tpu.memory_space<vmem>>)
    %c3_i32_44 = arith.constant 3 : i32
    %c0_i32_45 = arith.constant 0 : i32
    %69 = tpu.memref_slice %arg2[%24, %c0_i32_45] : memref<1000x128xf32, #tpu.memory_space<any>> -> memref<1x128xf32, #tpu.memory_space<any>>
    %c3_i32_46 = arith.constant 3 : i32
    %c0_i32_47 = arith.constant 0 : i32
    %70 = tpu.memref_slice %arg9[%c3_i32_46, %c0_i32_47] : memref<8x128xf32, #tpu.memory_space<vmem>> -> memref<1x128xf32, #tpu.memory_space<vmem>>
    %71 = tpu.memref_slice %arg10[%c3_i32_44] : memref<8x!tpu.dma_semaphore, #tpu.memory_space<semaphore_mem>> -> memref<1x!tpu.dma_semaphore, #tpu.memory_space<semaphore_mem>>
    %72 = tpu.memref_squeeze %71 : memref<1x!tpu.dma_semaphore, #tpu.memory_space<semaphore_mem>> -> memref<!tpu.dma_semaphore, #tpu.memory_space<semaphore_mem>>
    tpu.wait_dma2 semaphore(%72 : memref<!tpu.dma_semaphore, #tpu.memory_space<semaphore_mem>>) src(%69 : memref<1x128xf32, #tpu.memory_space<any>>) dst(%70 : memref<1x128xf32, #tpu.memory_space<vmem>>)
    %c4_i32_48 = arith.constant 4 : i32
    %c0_i32_49 = arith.constant 0 : i32
    %73 = tpu.memref_slice %arg2[%31, %c0_i32_49] : memref<1000x128xf32, #tpu.memory_space<any>> -> memref<1x128xf32, #tpu.memory_space<any>>
    %c4_i32_50 = arith.constant 4 : i32
    %c0_i32_51 = arith.constant 0 : i32
    %74 = tpu.memref_slice %arg9[%c4_i32_50, %c0_i32_51] : memref<8x128xf32, #tpu.memory_space<vmem>> -> memref<1x128xf32, #tpu.memory_space<vmem>>
    %75 = tpu.memref_slice %arg10[%c4_i32_48] : memref<8x!tpu.dma_semaphore, #tpu.memory_space<semaphore_mem>> -> memref<1x!tpu.dma_semaphore, #tpu.memory_space<semaphore_mem>>
    %76 = tpu.memref_squeeze %75 : memref<1x!tpu.dma_semaphore, #tpu.memory_space<semaphore_mem>> -> memref<!tpu.dma_semaphore, #tpu.memory_space<semaphore_mem>>
    tpu.wait_dma2 semaphore(%76 : memref<!tpu.dma_semaphore, #tpu.memory_space<semaphore_mem>>) src(%73 : memref<1x128xf32, #tpu.memory_space<any>>) dst(%74 : memref<1x128xf32, #tpu.memory_space<vmem>>)
    %c5_i32_52 = arith.constant 5 : i32
    %c0_i32_53 = arith.constant 0 : i32
    %77 = tpu.memref_slice %arg2[%38, %c0_i32_53] : memref<1000x128xf32, #tpu.memory_space<any>> -> memref<1x128xf32, #tpu.memory_space<any>>
    %c5_i32_54 = arith.constant 5 : i32
    %c0_i32_55 = arith.constant 0 : i32
    %78 = tpu.memref_slice %arg9[%c5_i32_54, %c0_i32_55] : memref<8x128xf32, #tpu.memory_space<vmem>> -> memref<1x128xf32, #tpu.memory_space<vmem>>
    %79 = tpu.memref_slice %arg10[%c5_i32_52] : memref<8x!tpu.dma_semaphore, #tpu.memory_space<semaphore_mem>> -> memref<1x!tpu.dma_semaphore, #tpu.memory_space<semaphore_mem>>
    %80 = tpu.memref_squeeze %79 : memref<1x!tpu.dma_semaphore, #tpu.memory_space<semaphore_mem>> -> memref<!tpu.dma_semaphore, #tpu.memory_space<semaphore_mem>>
    tpu.wait_dma2 semaphore(%80 : memref<!tpu.dma_semaphore, #tpu.memory_space<semaphore_mem>>) src(%77 : memref<1x128xf32, #tpu.memory_space<any>>) dst(%78 : memref<1x128xf32, #tpu.memory_space<vmem>>)
    %c6_i32_56 = arith.constant 6 : i32
    %c0_i32_57 = arith.constant 0 : i32
    %81 = tpu.memref_slice %arg2[%45, %c0_i32_57] : memref<1000x128xf32, #tpu.memory_space<any>> -> memref<1x128xf32, #tpu.memory_space<any>>
    %c6_i32_58 = arith.constant 6 : i32
    %c0_i32_59 = arith.constant 0 : i32
    %82 = tpu.memref_slice %arg9[%c6_i32_58, %c0_i32_59] : memref<8x128xf32, #tpu.memory_space<vmem>> -> memref<1x128xf32, #tpu.memory_space<vmem>>
    %83 = tpu.memref_slice %arg10[%c6_i32_56] : memref<8x!tpu.dma_semaphore, #tpu.memory_space<semaphore_mem>> -> memref<1x!tpu.dma_semaphore, #tpu.memory_space<semaphore_mem>>
    %84 = tpu.memref_squeeze %83 : memref<1x!tpu.dma_semaphore, #tpu.memory_space<semaphore_mem>> -> memref<!tpu.dma_semaphore, #tpu.memory_space<semaphore_mem>>
    tpu.wait_dma2 semaphore(%84 : memref<!tpu.dma_semaphore, #tpu.memory_space<semaphore_mem>>) src(%81 : memref<1x128xf32, #tpu.memory_space<any>>) dst(%82 : memref<1x128xf32, #tpu.memory_space<vmem>>)
    %c7_i32_60 = arith.constant 7 : i32
    %c0_i32_61 = arith.constant 0 : i32
    %85 = tpu.memref_slice %arg2[%52, %c0_i32_61] : memref<1000x128xf32, #tpu.memory_space<any>> -> memref<1x128xf32, #tpu.memory_space<any>>
    %c7_i32_62 = arith.constant 7 : i32
    %c0_i32_63 = arith.constant 0 : i32
    %86 = tpu.memref_slice %arg9[%c7_i32_62, %c0_i32_63] : memref<8x128xf32, #tpu.memory_space<vmem>> -> memref<1x128xf32, #tpu.memory_space<vmem>>
    %87 = tpu.memref_slice %arg10[%c7_i32_60] : memref<8x!tpu.dma_semaphore, #tpu.memory_space<semaphore_mem>> -> memref<1x!tpu.dma_semaphore, #tpu.memory_space<semaphore_mem>>
    %88 = tpu.memref_squeeze %87 : memref<1x!tpu.dma_semaphore, #tpu.memory_space<semaphore_mem>> -> memref<!tpu.dma_semaphore, #tpu.memory_space<semaphore_mem>>
    tpu.wait_dma2 semaphore(%88 : memref<!tpu.dma_semaphore, #tpu.memory_space<semaphore_mem>>) src(%85 : memref<1x128xf32, #tpu.memory_space<any>>) dst(%86 : memref<1x128xf32, #tpu.memory_space<vmem>>)
    %c0 = arith.constant 0 : index
    %c0_64 = arith.constant 0 : index
    %89 = vector.load %arg9[%c0, %c0_64] : memref<8x128xf32, #tpu.memory_space<vmem>>, vector<8x128xf32>
    %90 = arith.truncf %89 : vector<8x128xf32> to vector<8x128xbf16>
    %c0_65 = arith.constant 0 : index
    %c0_66 = arith.constant 0 : index
    %91 = vector.load %arg3[%c0_65, %c0_66] : memref<8x128xf32, #tpu.memory_space<vmem>>, vector<8x128xf32>
    %c0_67 = arith.constant 0 : index
    %c0_68 = arith.constant 0 : index
    %92 = vector.load %arg4[%c0_67, %c0_68] : memref<128x384xbf16, #tpu.memory_space<vmem>>, vector<128x384xbf16>
    %cst = arith.constant dense<0.000000e+00> : vector<8x384xf32>
    %93 = tpu.matmul %90, %92, %cst {dimension_numbers = #tpu.dot_dimension_numbers<[1], [0], [0], [1], [0, 0, 1, 1], [], []>} : vector<8x128xbf16>, vector<128x384xbf16>, vector<8x384xf32> -> vector<8x384xf32>
    %c0_69 = arith.constant 0 : index
    %c0_70 = arith.constant 0 : index
    %94 = vector.load %arg6[%c0_69, %c0_70] : memref<1x384xf32, #tpu.memory_space<vmem>>, vector<1x384xf32>
    %95 = vector.broadcast %94 : vector<1x384xf32> to vector<8x384xf32>
    %96 = arith.addf %93, %95 : vector<8x384xf32>
    %97 = arith.truncf %91 : vector<8x128xf32> to vector<8x128xbf16>
    %c0_71 = arith.constant 0 : index
    %c0_72 = arith.constant 0 : index
    %98 = vector.load %arg5[%c0_71, %c0_72] : memref<128x384xbf16, #tpu.memory_space<vmem>>, vector<128x384xbf16>
    %cst_73 = arith.constant dense<0.000000e+00> : vector<8x384xf32>
    %99 = tpu.matmul %97, %98, %cst_73 {dimension_numbers = #tpu.dot_dimension_numbers<[1], [0], [0], [1], [0, 0, 1, 1], [], []>} : vector<8x128xbf16>, vector<128x384xbf16>, vector<8x384xf32> -> vector<8x384xf32>
    %c0_74 = arith.constant 0 : index
    %c0_75 = arith.constant 0 : index
    %100 = vector.load %arg7[%c0_74, %c0_75] : memref<1x384xf32, #tpu.memory_space<vmem>>, vector<1x384xf32>
    %101 = vector.broadcast %100 : vector<1x384xf32> to vector<8x384xf32>
    %102 = arith.addf %99, %101 : vector<8x384xf32>
    %103 = vector.extract_strided_slice %96 {offsets = [0, 0], sizes = [8, 128], strides = [1, 1]} : vector<8x384xf32> to vector<8x128xf32>
    %104 = vector.extract_strided_slice %102 {offsets = [0, 0], sizes = [8, 128], strides = [1, 1]} : vector<8x384xf32> to vector<8x128xf32>
    %105 = arith.addf %103, %104 : vector<8x128xf32>
    %106 = arith.negf %105 : vector<8x128xf32>
    %107 = math.exp %106 : vector<8x128xf32>
    %cst_76 = arith.constant 1.000000e+00 : f32
    %108 = vector.broadcast %cst_76 : f32 to vector<8x128xf32>
    %109 = arith.addf %108, %107 : vector<8x128xf32>
    %110 = arith.divf %108, %109 : vector<8x128xf32>
    %111 = vector.extract_strided_slice %96 {offsets = [0, 128], sizes = [8, 128], strides = [1, 1]} : vector<8x384xf32> to vector<8x128xf32>
    %112 = vector.extract_strided_slice %102 {offsets = [0, 128], sizes = [8, 128], strides = [1, 1]} : vector<8x384xf32> to vector<8x128xf32>
    %113 = arith.addf %111, %112 : vector<8x128xf32>
    %114 = arith.negf %113 : vector<8x128xf32>
    %115 = math.exp %114 : vector<8x128xf32>
    %cst_77 = arith.constant 1.000000e+00 : f32
    %116 = vector.broadcast %cst_77 : f32 to vector<8x128xf32>
    %117 = arith.addf %116, %115 : vector<8x128xf32>
    %118 = arith.divf %116, %117 : vector<8x128xf32>
    %119 = vector.extract_strided_slice %96 {offsets = [0, 256], sizes = [8, 128], strides = [1, 1]} : vector<8x384xf32> to vector<8x128xf32>
    %120 = vector.extract_strided_slice %102 {offsets = [0, 256], sizes = [8, 128], strides = [1, 1]} : vector<8x384xf32> to vector<8x128xf32>
    %121 = arith.mulf %110, %120 : vector<8x128xf32>
    %122 = arith.addf %119, %121 : vector<8x128xf32>
    %123 = math.tanh %122 : vector<8x128xf32>
    %cst_78 = arith.constant 1.000000e+00 : f32
    %124 = vector.broadcast %cst_78 : f32 to vector<8x128xf32>
    %125 = arith.subf %124, %118 : vector<8x128xf32>
    %126 = arith.mulf %125, %123 : vector<8x128xf32>
    %127 = arith.mulf %118, %91 : vector<8x128xf32>
    %128 = arith.addf %126, %127 : vector<8x128xf32>
    %c0_79 = arith.constant 0 : index
    %c0_80 = arith.constant 0 : index
    %129 = vector.load %arg8[%c0_79, %c0_80] : memref<8x128xf32, #tpu.memory_space<vmem>>, vector<8x128xf32>
    tpu.vector_store %arg8[%c0_79, %c0_80], %128 {strides = array<i32>} : memref<8x128xf32, #tpu.memory_space<vmem>>, vector<8x128xf32>,
    return
  }
  func.func @transform_1(%arg0: i32, %arg1: memref<8xi32, #tpu.memory_space<smem>>) -> (i32, i32) {
    %c0_i32 = arith.constant 0 : i32
    %c0_i32_0 = arith.constant 0 : i32
    return %arg0, %c0_i32 : i32, i32
  }
  func.func @transform_2(%arg0: i32, %arg1: memref<8xi32, #tpu.memory_space<smem>>) -> (i32, i32) {
    %c0_i32 = arith.constant 0 : i32
    %c0_i32_0 = arith.constant 0 : i32
    %c0_i32_1 = arith.constant 0 : i32
    return %c0_i32, %c0_i32_0 : i32, i32
  }
  func.func @transform_3(%arg0: i32, %arg1: memref<8xi32, #tpu.memory_space<smem>>) -> (i32, i32) {
    %c0_i32 = arith.constant 0 : i32
    %c0_i32_0 = arith.constant 0 : i32
    %c0_i32_1 = arith.constant 0 : i32
    return %c0_i32, %c0_i32_0 : i32, i32
  }
  func.func @transform_4(%arg0: i32, %arg1: memref<8xi32, #tpu.memory_space<smem>>) -> (i32, i32) {
    %c0_i32 = arith.constant 0 : i32
    %c0_i32_0 = arith.constant 0 : i32
    %c0_i32_1 = arith.constant 0 : i32
    return %c0_i32, %c0_i32_0 : i32, i32
  }
  func.func @transform_5(%arg0: i32, %arg1: memref<8xi32, #tpu.memory_space<smem>>) -> (i32, i32) {
    %c0_i32 = arith.constant 0 : i32
    %c0_i32_0 = arith.constant 0 : i32
    %c0_i32_1 = arith.constant 0 : i32
    return %c0_i32, %c0_i32_0 : i32, i32
  }
  func.func @transform_6(%arg0: i32, %arg1: memref<8xi32, #tpu.memory_space<smem>>) -> (i32, i32) {
    %c0_i32 = arith.constant 0 : i32
    %c0_i32_0 = arith.constant 0 : i32
    return %arg0, %c0_i32 : i32, i32
  }
}

</mosaic_0001>

<llo_original>
// kernel: tpu_custom_call.1
$region0: #{tpu_custom_call.1}
  #allocation0 [shape = 'u32[]', space=smem, size = 0x4, offset = 0x4, fixed_abs, tag = 'smem constant byte address 0x4 - core index']
  #allocation1 [shape = 'u32[144,128]{1,0:T(1,128)}', space=vmem, size = 0x12000, scoped, tag = 'internal scratch']
  #allocation2 [shape = 'f32[8,128]{1,0:T(8,128)}', space=vmem, size = 0x1000, scoped, tag = 'scratch operand']
  #allocation3 [shape = 's32[8]{0}', space=sflag, size = 0x20, scoped, tag = 'scratch operand']
  #allocation4 [shape = 's32[1]{0}', space=sflag, size = 0x4, scoped, tag = 'scoped memory for tpu_custom_call.1']
  #allocation5 [shape = 'u8[512]{0}', space=smem, size = 0x200, scoped, tag = 'prefetched SMEM operand 0']
  #allocation13 [shape = 's32[]', space=sflag, size = 0x4, offset = 0, fixed_abs, tag = 'sflag constant byte address 0x0 - dummy sync flag']
  #allocation14 [shape = 's32[]', space=sflag, size = 0x4, offset = 0, fixed_abs, tag = 'sflag constant byte address 0x0 - dummy sync flag']
  #allocation15 [shape = 'u32[]', space=smem, size = 0x4, offset = 0x44, fixed_abs, tag = 'smem constant byte address 0x44 - assertion arg 0']
  #allocation16 [shape = 'u32[]', space=smem, size = 0x4, offset = 0x48, fixed_abs, tag = 'smem constant byte address 0x48 - assertion arg 1']
  #allocation17 [shape = 's32[]', space=sflag, size = 0x4, offset = 0, fixed_abs, tag = 'sflag constant byte address 0x0 - dummy sync flag']
  #allocation18 [shape = 's32[]', space=sflag, size = 0x4, offset = 0, fixed_abs, tag = 'sflag constant byte address 0x0 - dummy sync flag']
  #allocation19 [shape = 's32[]', space=sflag, size = 0x4, offset = 0, fixed_abs, tag = 'sflag constant byte address 0x0 - dummy sync flag']
  #allocation20 [shape = 's32[]', space=sflag, size = 0x4, offset = 0, fixed_abs, tag = 'sflag constant byte address 0x0 - dummy sync flag']
  #allocation21 [shape = 's32[]', space=sflag, size = 0x4, offset = 0, fixed_abs, tag = 'sflag constant byte address 0x0 - dummy sync flag']
  #allocation22 [shape = 's32[]', space=sflag, size = 0x4, offset = 0, fixed_abs, tag = 'sflag constant byte address 0x0 - dummy sync flag']
  #allocation23 [shape = 's32[]', space=sflag, size = 0x4, offset = 0, fixed_abs, tag = 'sflag constant byte address 0x0 - dummy sync flag']
  #allocation24 [shape = 's32[]', space=sflag, size = 0x4, offset = 0, fixed_abs, tag = 'sflag constant byte address 0x0 - dummy sync flag']
  #allocation25 [shape = 's32[]', space=sflag, size = 0x4, offset = 0, fixed_abs, tag = 'sflag constant byte address 0x0 - dummy sync flag']
  #allocation26 [shape = 's32[]', space=sflag, size = 0x4, offset = 0, fixed_abs, tag = 'sflag constant byte address 0x0 - dummy sync flag']
  #allocation27 [shape = 's32[]', space=sflag, size = 0x4, offset = 0, fixed_abs, tag = 'sflag constant byte address 0x0 - dummy sync flag']
  #allocation28 [shape = 's32[]', space=sflag, size = 0x4, offset = 0, fixed_abs, tag = 'sflag constant byte address 0x0 - dummy sync flag']
  #allocation29 [shape = 's32[]', space=sflag, size = 0x4, offset = 0, fixed_abs, tag = 'sflag constant byte address 0x0 - dummy sync flag']
  #allocation30 [shape = 's32[]', space=sflag, size = 0x4, offset = 0, fixed_abs, tag = 'sflag constant byte address 0x0 - dummy sync flag']
  %s0 = inlined_call_operand.hbm [shape: s32[8], index: 0, kind: input, shape index: {}]
  %s1 = inlined_call_operand.hbm [shape: f32[1000,128], index: 1, kind: input, shape index: {}]
  %s2 = inlined_call_operand.hbm [shape: f32[8,128], index: 2, kind: input, shape index: {}]
  %s3 = inlined_call_operand.hbm [shape: bf16[128,384], index: 3, kind: input, shape index: {}]
  %s4 = inlined_call_operand.hbm [shape: bf16[128,384], index: 4, kind: input, shape index: {}]
  %s5 = inlined_call_operand.vmem [shape: f32[1,384], index: 5, kind: input, shape index: {}]
  %s6 = inlined_call_operand.vmem [shape: f32[1,384], index: 6, kind: input, shape index: {}]
  %s7 = inlined_call_operand.hbm [shape: f32[8,128], index: 7, kind: output, shape index: {}]
  %s8 = sld [smem:[#allocation0]]
  $region74: #{tpu_custom_call.1} parent=0
    _
  %s10 = ssub.s32 1, %s8
  %s11 = scalar_select 0, %s10, %s8
  %13 = dma.hbm_to_smem %s0, 16, [#allocation5], [#allocation4]
  %14 = dma.done [#allocation4], 16
  %15 = sfence
  $region1: #{tpu_custom_call.1} parent=0
    #allocation6 [shape = 'u8[4096]{0}', space=vmem, size = 0x1000, scoped, tag = 'input window, operand 2, single buffered']
    #allocation7 [shape = 's32[1]{0}', space=sflag, size = 0x4, scoped, tag = 'scoped memory for tpu_custom_call.1']
    #allocation8 [shape = 's32[1]{0}', space=sflag, size = 0x4, scoped, tag = 'scoped memory for tpu_custom_call.1']
    #allocation9 [shape = 'u8[98304]{0}', space=vmem, size = 0x18000, scoped, tag = 'input window, operand 3, single buffered']
    #allocation10 [shape = 's32[1]{0}', space=sflag, size = 0x4, scoped, tag = 'scoped memory for tpu_custom_call.1']
    #allocation11 [shape = 'u8[98304]{0}', space=vmem, size = 0x18000, scoped, tag = 'input window, operand 4, single buffered']
    #allocation12 [shape = 'u8[4096]{0}', space=vmem, size = 0x1000, scoped, tag = 'output window, operand 0, single buffered']
    %16 = vsyncpa [#allocation7], 0
    %17 = vsyncpa [#allocation10], 0
    %18 = vsyncpa [#allocation8], 0
    // Predicated region
    $region2: #{tpu_custom_call.1} parent=1 // pred_check
      _
    $region3: #{tpu_custom_call.1} parent=1 // pred_check_branch
      %20 = sbr.rel (0) target = $region5
    $region4: #{tpu_custom_call.1} parent=1 // pred_region
      %s22 = ssub.s32 128, 128
      %23 = vsyncadd [#allocation7], %s22
      %s25 = sshll.u32 [#allocation6], 4
      %s26 = int_to_ptr.vmem [resolvable:$true] %s25
      %28 = dma.hbm_to_vmem [thread:$0]  %s2, 128, %s26, [#allocation7]
    $region5: #{tpu_custom_call.1} parent=1 // pred_fallthru
      _
    // Predicated region
    $region6: #{tpu_custom_call.1} parent=1 // pred_check
      _
    $region7: #{tpu_custom_call.1} parent=1 // pred_check_branch
      %30 = sbr.rel (0) target = $region9
    $region8: #{tpu_custom_call.1} parent=1 // pred_region
      %s32 = ssub.s32 3072, 3072
      %33 = vsyncadd [#allocation10], %s32
      %s34 = sshll.u32 [#allocation9], 4
      %s35 = int_to_ptr.vmem [resolvable:$true] %s34
      %40 = dma.hbm_to_vmem [thread:$0]  %s3, 3072, %s35, [#allocation10], 192, 192, 12
    $region9: #{tpu_custom_call.1} parent=1 // pred_fallthru
      _
    // Predicated region
    $region10: #{tpu_custom_call.1} parent=1 // pred_check
      _
    $region11: #{tpu_custom_call.1} parent=1 // pred_check_branch
      %42 = sbr.rel (0) target = $region13
    $region12: #{tpu_custom_call.1} parent=1 // pred_region
      %s44 = ssub.s32 3072, 3072
      %45 = vsyncadd [#allocation10], %s44
      %s46 = sshll.u32 [#allocation11], 4
      %s47 = int_to_ptr.vmem [resolvable:$true] %s46
      %52 = dma.hbm_to_vmem [thread:$0]  %s4, 3072, %s47, [#allocation10], 192, 192, 12
    $region13: #{tpu_custom_call.1} parent=1 // pred_fallthru
      _
    // Predicated region
    $region14: #{tpu_custom_call.1} parent=1 // pred_check
      _
    $region15: #{tpu_custom_call.1} parent=1 // pred_check_branch
      %54 = sbr.rel (0) target = $region17
    $region16: #{tpu_custom_call.1} parent=1 // pred_region
      _
    $region17: #{tpu_custom_call.1} parent=1 // pred_fallthru
      _
    // Predicated region
    $region18: #{tpu_custom_call.1} parent=1 // pred_check
      _
    $region19: #{tpu_custom_call.1} parent=1 // pred_check_branch
      %56 = sbr.rel (0) target = $region21
    $region20: #{tpu_custom_call.1} parent=1 // pred_region
      _
    $region21: #{tpu_custom_call.1} parent=1 // pred_fallthru
      _
    // Predicated region
    $region22: #{tpu_custom_call.1} parent=1 // pred_check
      _
    $region23: #{tpu_custom_call.1} parent=1 // pred_check_branch
      %58 = sbr.rel (0) target = $region25
    $region24: #{tpu_custom_call.1} parent=1 // pred_region
      %59 = dma.done [#allocation7], 128
    $region25: #{tpu_custom_call.1} parent=1 // pred_fallthru
      _
    // Predicated region
    $region26: #{tpu_custom_call.1} parent=1 // pred_check
      _
    $region27: #{tpu_custom_call.1} parent=1 // pred_check_branch
      %61 = sbr.rel (0) target = $region29
    $region28: #{tpu_custom_call.1} parent=1 // pred_region
      %62 = dma.done [#allocation10], 3072
    $region29: #{tpu_custom_call.1} parent=1 // pred_fallthru
      _
    // Predicated region
    $region30: #{tpu_custom_call.1} parent=1 // pred_check
      _
    $region31: #{tpu_custom_call.1} parent=1 // pred_check_branch
      %64 = sbr.rel (0) target = $region33
    $region32: #{tpu_custom_call.1} parent=1 // pred_region
      %65 = dma.done [#allocation10], 3072
    $region33: #{tpu_custom_call.1} parent=1 // pred_fallthru
      _
    %s67 = smul.u32 0, 8
    %s68 = sld [smem:[#allocation5 + %s67]]
    %s69 = smul.addr %s68, 16
    %s70 = scalar_lea.hbm %s1, %s69
    // Predicated region
    $region34: #{tpu_custom_call.1} parent=1 // pred_check
      _
    $region35: #{tpu_custom_call.1} parent=1 // pred_check_branch
      %72 = sbr.rel target = $region37
    $region36: #{tpu_custom_call.1} parent=1 // pred_region
      %73 = sst [smem:[#allocation15]] [#allocation14]
      %74 = sst [smem:[#allocation16]] [#allocation13]
    $region37: #{tpu_custom_call.1} parent=1 // pred_fallthru
      _
    %76 = shalt.err (0)
    %s78 = sshll.u32 [#allocation2], 4
    %s79 = int_to_ptr.vmem [resolvable:$true] %s78
    %81 = dma.hbm_to_vmem [thread:$0]  %s70, 16, %s79, [#allocation3]
    %s82 = sadd.s32 %s67, 1
    %s83 = sld [smem:[#allocation5 + %s82]]
    %s84 = smul.addr %s83, 16
    %s85 = scalar_lea.hbm %s1, %s84
    %s86 = scalar_lea.vmem [#allocation2], 1
    %s87 = scalar_lea.sflag [#allocation3], 1
    // Predicated region
    $region38: #{tpu_custom_call.1} parent=1 // pred_check
      _
    $region39: #{tpu_custom_call.1} parent=1 // pred_check_branch
      %89 = sbr.rel target = $region41
    $region40: #{tpu_custom_call.1} parent=1 // pred_region
      %90 = sst [smem:[#allocation15]] [#allocation18]
      %91 = sst [smem:[#allocation16]] [#allocation17]
    $region41: #{tpu_custom_call.1} parent=1 // pred_fallthru
      _
    %93 = shalt.err (0)
    %s95 = sshll.u32 %s86, 4
    %s96 = int_to_ptr.vmem [resolvable:$true] %s95
    %98 = dma.hbm_to_vmem [thread:$0]  %s85, 16, %s96, %s87
    %s99 = sadd.s32 %s67, 2
    %s100 = sld [smem:[#allocation5 + %s99]]
    %s101 = smul.addr %s100, 16
    %s102 = scalar_lea.hbm %s1, %s101
    %s103 = scalar_lea.vmem [#allocation2], 2
    %s104 = scalar_lea.sflag [#allocation3], 2
    // Predicated region
    $region42: #{tpu_custom_call.1} parent=1 // pred_check
      _
    $region43: #{tpu_custom_call.1} parent=1 // pred_check_branch
      %106 = sbr.rel target = $region45
    $region44: #{tpu_custom_call.1} parent=1 // pred_region
      %107 = sst [smem:[#allocation15]] [#allocation20]
      %108 = sst [smem:[#allocation16]] [#allocation19]
    $region45: #{tpu_custom_call.1} parent=1 // pred_fallthru
      _
    %110 = shalt.err (0)
    %s112 = sshll.u32 %s103, 4
    %s113 = int_to_ptr.vmem [resolvable:$true] %s112
    %115 = dma.hbm_to_vmem [thread:$0]  %s102, 16, %s113, %s104
    %s116 = sadd.s32 %s67, 3
    %s117 = sld [smem:[#allocation5 + %s116]]
    %s118 = smul.addr %s117, 16
    %s119 = scalar_lea.hbm %s1, %s118
    %s120 = scalar_lea.vmem [#allocation2], 3
    %s121 = scalar_lea.sflag [#allocation3], 3
    // Predicated region
    $region46: #{tpu_custom_call.1} parent=1 // pred_check
      _
    $region47: #{tpu_custom_call.1} parent=1 // pred_check_branch
      %123 = sbr.rel target = $region49
    $region48: #{tpu_custom_call.1} parent=1 // pred_region
      %124 = sst [smem:[#allocation15]] [#allocation22]
      %125 = sst [smem:[#allocation16]] [#allocation21]
    $region49: #{tpu_custom_call.1} parent=1 // pred_fallthru
      _
    %127 = shalt.err (0)
    %s129 = sshll.u32 %s120, 4
    %s130 = int_to_ptr.vmem [resolvable:$true] %s129
    %132 = dma.hbm_to_vmem [thread:$0]  %s119, 16, %s130, %s121
    %s133 = sadd.s32 %s67, 4
    %s134 = sld [smem:[#allocation5 + %s133]]
    %s135 = smul.addr %s134, 16
    %s136 = scalar_lea.hbm %s1, %s135
    %s137 = scalar_lea.vmem [#allocation2], 4
    %s138 = scalar_lea.sflag [#allocation3], 4
    // Predicated region
    $region50: #{tpu_custom_call.1} parent=1 // pred_check
      _
    $region51: #{tpu_custom_call.1} parent=1 // pred_check_branch
      %140 = sbr.rel target = $region53
    $region52: #{tpu_custom_call.1} parent=1 // pred_region
      %141 = sst [smem:[#allocation15]] [#allocation24]
      %142 = sst [smem:[#allocation16]] [#allocation23]
    $region53: #{tpu_custom_call.1} parent=1 // pred_fallthru
      _
    %144 = shalt.err (0)
    %s146 = sshll.u32 %s137, 4
    %s147 = int_to_ptr.vmem [resolvable:$true] %s146
    %149 = dma.hbm_to_vmem [thread:$0]  %s136, 16, %s147, %s138
    %s150 = sadd.s32 %s67, 5
    %s151 = sld [smem:[#allocation5 + %s150]]
    %s152 = smul.addr %s151, 16
    %s153 = scalar_lea.hbm %s1, %s152
    %s154 = scalar_lea.vmem [#allocation2], 5
    %s155 = scalar_lea.sflag [#allocation3], 5
    // Predicated region
    $region54: #{tpu_custom_call.1} parent=1 // pred_check
      _
    $region55: #{tpu_custom_call.1} parent=1 // pred_check_branch
      %157 = sbr.rel target = $region57
    $region56: #{tpu_custom_call.1} parent=1 // pred_region
      %158 = sst [smem:[#allocation15]] [#allocation26]
      %159 = sst [smem:[#allocation16]] [#allocation25]
    $region57: #{tpu_custom_call.1} parent=1 // pred_fallthru
      _
    %161 = shalt.err (0)
    %s163 = sshll.u32 %s154, 4
    %s164 = int_to_ptr.vmem [resolvable:$true] %s163
    %166 = dma.hbm_to_vmem [thread:$0]  %s153, 16, %s164, %s155
    %s167 = sadd.s32 %s67, 6
    %s168 = sld [smem:[#allocation5 + %s167]]
    %s169 = smul.addr %s168, 16
    %s170 = scalar_lea.hbm %s1, %s169
    %s171 = scalar_lea.vmem [#allocation2], 6
    %s172 = scalar_lea.sflag [#allocation3], 6
    // Predicated region
    $region58: #{tpu_custom_call.1} parent=1 // pred_check
      _
    $region59: #{tpu_custom_call.1} parent=1 // pred_check_branch
      %174 = sbr.rel target = $region61
    $region60: #{tpu_custom_call.1} parent=1 // pred_region
      %175 = sst [smem:[#allocation15]] [#allocation28]
      %176 = sst [smem:[#allocation16]] [#allocation27]
    $region61: #{tpu_custom_call.1} parent=1 // pred_fallthru
      _
    %178 = shalt.err (0)
    %s180 = sshll.u32 %s171, 4
    %s181 = int_to_ptr.vmem [resolvable:$true] %s180
    %183 = dma.hbm_to_vmem [thread:$0]  %s170, 16, %s181, %s172
    %s184 = sadd.s32 %s67, 7
    %s185 = sld [smem:[#allocation5 + %s184]]
    %s186 = smul.addr %s185, 16
    %s187 = scalar_lea.hbm %s1, %s186
    %s188 = scalar_lea.vmem [#allocation2], 7
    %s189 = scalar_lea.sflag [#allocation3], 7
    // Predicated region
    $region62: #{tpu_custom_call.1} parent=1 // pred_check
      _
    $region63: #{tpu_custom_call.1} parent=1 // pred_check_branch
      %191 = sbr.rel target = $region65
    $region64: #{tpu_custom_call.1} parent=1 // pred_region
      %192 = sst [smem:[#allocation15]] [#allocation30]
      %193 = sst [smem:[#allocation16]] [#allocation29]
    $region65: #{tpu_custom_call.1} parent=1 // pred_fallthru
      _
    %195 = shalt.err (0)
    %s197 = sshll.u32 %s188, 4
    %s198 = int_to_ptr.vmem [resolvable:$true] %s197
    %200 = dma.hbm_to_vmem [thread:$0]  %s187, 16, %s198, %s189
    %s201 = smul.u32 1, 1
    %s202 = sshll.u32 %s201, 4
    %203 = dma.done [#allocation3], %s202
    %s204 = sshll.u32 %s201, 4
    %205 = dma.done %s87, %s204
    %s206 = sshll.u32 %s201, 4
    %207 = dma.done %s104, %s206
    %s208 = sshll.u32 %s201, 4
    %209 = dma.done %s121, %s208
    %s210 = sshll.u32 %s201, 4
    %211 = dma.done %s138, %s210
    %s212 = sshll.u32 %s201, 4
    %213 = dma.done %s155, %s212
    %s214 = sshll.u32 %s201, 4
    %215 = dma.done %s172, %s214
    %s216 = sshll.u32 %s201, 4
    %217 = dma.done %s189, %s216
    %v218 = vld [vmem:[#allocation2] sm:$0xff]
    %v219 = vpack.c.bf16 %v218, %v218
    %v220 = vld [vmem:[#allocation6] sm:$0xff]
    %v221 = vld [vmem:[#allocation9] sm:$0xff]
    %v222 = vld [vmem:[#allocation9 + $0x8] sm:$0xf]
    %v223 = vld [vmem:[#allocation9 + $0xc] sm:$0xff]
    %v224 = vld [vmem:[#allocation9 + $0x14] sm:$0xf]
    %v225 = vld [vmem:[#allocation9 + $0x18] sm:$0xff]
    %v226 = vld [vmem:[#allocation9 + $0x20] sm:$0xf]
    %v227 = vld [vmem:[#allocation9 + $0x24] sm:$0xff]
    %v228 = vld [vmem:[#allocation9 + $0x2c] sm:$0xf]
    %v229 = vld [vmem:[#allocation9 + $0x30] sm:$0xff]
    %v230 = vld [vmem:[#allocation9 + $0x38] sm:$0xf]
    %v231 = vld [vmem:[#allocation9 + $0x3c] sm:$0xff]
    %v232 = vld [vmem:[#allocation9 + $0x44] sm:$0xf]
    %v233 = vld [vmem:[#allocation9 + $0x48] sm:$0xff]
    %v234 = vld [vmem:[#allocation9 + $0x50] sm:$0xf]
    %v235 = vld [vmem:[#allocation9 + $0x54] sm:$0xff]
    %v236 = vld [vmem:[#allocation9 + $0x5c] sm:$0xf]
    %v237 = vld [vmem:[#allocation9 + $0x60] sm:$0xff]
    %v238 = vld [vmem:[#allocation9 + $0x68] sm:$0xf]
    %v239 = vld [vmem:[#allocation9 + $0x6c] sm:$0xff]
    %v240 = vld [vmem:[#allocation9 + $0x74] sm:$0xf]
    %v241 = vld [vmem:[#allocation9 + $0x78] sm:$0xff]
    %v242 = vld [vmem:[#allocation9 + $0x80] sm:$0xf]
    %v243 = vld [vmem:[#allocation9 + $0x84] sm:$0xff]
    %v244 = vld [vmem:[#allocation9 + $0x8c] sm:$0xf]
    %v245 = vld [vmem:[#allocation9 + $0x90] sm:$0xff]
    %v246 = vld [vmem:[#allocation9 + $0x98] sm:$0xf]
    %v247 = vld [vmem:[#allocation9 + $0x9c] sm:$0xff]
    %v248 = vld [vmem:[#allocation9 + $0xa4] sm:$0xf]
    %v249 = vld [vmem:[#allocation9 + $0xa8] sm:$0xff]
    %v250 = vld [vmem:[#allocation9 + $0xb0] sm:$0xf]
    %v251 = vld [vmem:[#allocation9 + $0xb4] sm:$0xff]
    %v252 = vld [vmem:[#allocation9 + $0xbc] sm:$0xf]
    %v253 = vld [vmem:[%s5] sm:$0x7]
    %v255 = vlaneseq
    %v256 = vshrl.u32 %v255, 7
    %v257 = vsub.s32 0, %v256
    %v258 = vrot.slane %v253, %v257
    %v259 = vlaneseq
    %v260 = vshrl.u32 %v259, 7
    %v261 = vsub.s32 1, %v260
    %v262 = vrot.slane %v253, %v261
    %v263 = vlaneseq
    %v264 = vshrl.u32 %v263, 7
    %v265 = vsub.s32 2, %v264
    %v266 = vrot.slane %v253, %v265
    %v302 = vunpack.c.l.b16 %v221
    %v303 = vunpack.c.h.b16 %v221
    %v304 = vunpack.c.l.b16 %v222
    %v305 = vunpack.c.l.b16 %v223
    %v306 = vunpack.c.h.b16 %v223
    %v307 = vunpack.c.l.b16 %v224
    %v308 = vunpack.c.l.b16 %v225
    %v309 = vunpack.c.h.b16 %v225
    %v310 = vunpack.c.l.b16 %v226
    %v311 = vunpack.c.l.b16 %v227
    %v312 = vunpack.c.h.b16 %v227
    %v313 = vunpack.c.l.b16 %v228
    %v314 = vunpack.c.l.b16 %v229
    %v315 = vunpack.c.h.b16 %v229
    %v316 = vunpack.c.l.b16 %v230
    %v317 = vunpack.c.l.b16 %v231
    %v318 = vunpack.c.h.b16 %v231
    %v319 = vunpack.c.l.b16 %v232
    %v320 = vunpack.c.l.b16 %v233
    %v321 = vunpack.c.h.b16 %v233
    %v322 = vunpack.c.l.b16 %v234
    %v323 = vunpack.c.l.b16 %v235
    %v324 = vunpack.c.h.b16 %v235
    %v325 = vunpack.c.l.b16 %v236
    %v326 = vunpack.c.l.b16 %v237
    %v327 = vunpack.c.h.b16 %v237
    %v328 = vunpack.c.l.b16 %v238
    %v329 = vunpack.c.l.b16 %v239
    %v330 = vunpack.c.h.b16 %v239
    %v331 = vunpack.c.l.b16 %v240
    %v332 = vunpack.c.l.b16 %v241
    %v333 = vunpack.c.h.b16 %v241
    %v334 = vunpack.c.l.b16 %v242
    %v335 = vunpack.c.l.b16 %v243
    %v336 = vunpack.c.h.b16 %v243
    %v337 = vunpack.c.l.b16 %v244
    %v338 = vunpack.c.l.b16 %v245
    %v339 = vunpack.c.h.b16 %v245
    %v340 = vunpack.c.l.b16 %v246
    %v341 = vunpack.c.l.b16 %v247
    %v342 = vunpack.c.h.b16 %v247
    %v343 = vunpack.c.l.b16 %v248
    %v344 = vunpack.c.l.b16 %v249
    %v345 = vunpack.c.h.b16 %v249
    %v346 = vunpack.c.l.b16 %v250
    %v347 = vunpack.c.l.b16 %v251
    %v348 = vunpack.c.h.b16 %v251
    %v349 = vunpack.c.l.b16 %v252
    %v350 = vpack.c.b16 %v305, %v302
    %v351 = vpack.c.b16 %v306, %v303
    %v352 = vpack.c.b16 %v307, %v304
    %v353 = vpack.c.b16 %v311, %v308
    %v354 = vpack.c.b16 %v312, %v309
    %v355 = vpack.c.b16 %v313, %v310
    %v356 = vpack.c.b16 %v317, %v314
    %v357 = vpack.c.b16 %v318, %v315
    %v358 = vpack.c.b16 %v319, %v316
    %v359 = vpack.c.b16 %v323, %v320
    %v360 = vpack.c.b16 %v324, %v321
    %v361 = vpack.c.b16 %v325, %v322
    %v362 = vpack.c.b16 %v329, %v326
    %v363 = vpack.c.b16 %v330, %v327
    %v364 = vpack.c.b16 %v331, %v328
    %v365 = vpack.c.b16 %v335, %v332
    %v366 = vpack.c.b16 %v336, %v333
    %v367 = vpack.c.b16 %v337, %v334
    %v368 = vpack.c.b16 %v341, %v338
    %v369 = vpack.c.b16 %v342, %v339
    %v370 = vpack.c.b16 %v343, %v340
    %v371 = vpack.c.b16 %v347, %v344
    %v372 = vpack.c.b16 %v348, %v345
    %v373 = vpack.c.b16 %v349, %v346
    %398 = vmatprep.subr.bf16.mxu0 %v372
    %399 = vmatpush1.bf16.msra.mxu0 %v371
    %400 = vmatprep.subr.bf16.mxu0 %v369
    %401 = vmatpush1.bf16.msra.mxu0 %v368
    %402 = vmatprep.subr.bf16.mxu0 %v366
    %403 = vmatpush1.bf16.msra.mxu0 %v365
    %404 = vmatprep.subr.bf16.mxu0 %v363
    %405 = vmatpush1.bf16.msra.mxu0 %v362
    %406 = vmatprep.subr.bf16.mxu0 %v360
    %407 = vmatpush1.bf16.msra.mxu0 %v359
    %408 = vmatprep.subr.bf16.mxu0 %v357
    %409 = vmatpush1.bf16.msra.mxu0 %v356
    %410 = vmatprep.subr.bf16.mxu0 %v354
    %411 = vmatpush1.bf16.msra.mxu0 %v353
    %412 = vmatprep.subr.bf16.mxu0 %v351
    %413 = vmatpush1.bf16.msra.mxu0 %v350
    %414 = vmatprep.subr.bf16.mxu0 0
    %415 = vmatpush2.bf16.msra.mxu0 0
    %416 = vmatprep.subr.bf16.mxu0 0
    %417 = vmatpush2.bf16.msra.mxu0 0
    %418 = vmatprep.subr.bf16.mxu0 0
    %419 = vmatpush2.bf16.msra.mxu0 0
    %420 = vmatprep.subr.bf16.mxu0 0
    %421 = vmatpush2.bf16.msra.mxu0 0
    %422 = vmatprep.subr.bf16.mxu0 0
    %423 = vmatpush2.bf16.msra.mxu0 0
    %424 = vmatprep.subr.bf16.mxu0 0
    %425 = vmatpush2.bf16.msra.mxu0 0
    %426 = vmatprep.subr.bf16.mxu0 0
    %427 = vmatpush2.bf16.msra.mxu0 0
    %428 = vmatprep.subr.bf16.mxu0 0
    %429 = vmatpush2.bf16.msra.mxu0 0
    %430 = vmatprep.mubr.bf16.mxu0 0
    %431 = vmatmul.mubr.bf16.gmra.mxu0 %v219
    %v432 = vpop.f32.mrf.mxu0
    %v433 = vadd.f32 %v258, %v432
    %v434 = vpop.f32.mrf.mxu0
    %v435 = vadd.f32 %v262, %v434
    %v436 = vpop.f32.mrf.mxu0
    %v437 = vpop.f32.mrf.mxu0
    %438 = vdwg.mxu0
    %439 = vmatprep.subr.bf16.mxu0 0
    %440 = vmatpush1.bf16.msra.mxu0 %v373
    %441 = vmatprep.subr.bf16.mxu0 0
    %442 = vmatpush1.bf16.msra.mxu0 %v370
    %443 = vmatprep.subr.bf16.mxu0 0
    %444 = vmatpush1.bf16.msra.mxu0 %v367
    %445 = vmatprep.subr.bf16.mxu0 0
    %446 = vmatpush1.bf16.msra.mxu0 %v364
    %447 = vmatprep.subr.bf16.mxu0 0
    %448 = vmatpush1.bf16.msra.mxu0 %v361
    %449 = vmatprep.subr.bf16.mxu0 0
    %450 = vmatpush1.bf16.msra.mxu0 %v358
    %451 = vmatprep.subr.bf16.mxu0 0
    %452 = vmatpush1.bf16.msra.mxu0 %v355
    %453 = vmatprep.subr.bf16.mxu0 0
    %454 = vmatpush1.bf16.msra.mxu0 %v352
    %455 = vmatprep.subr.bf16.mxu0 0
    %456 = vmatpush2.bf16.msra.mxu0 0
    %457 = vmatprep.subr.bf16.mxu0 0
    %458 = vmatpush2.bf16.msra.mxu0 0
    %459 = vmatprep.subr.bf16.mxu0 0
    %460 = vmatpush2.bf16.msra.mxu0 0
    %461 = vmatprep.subr.bf16.mxu0 0
    %462 = vmatpush2.bf16.msra.mxu0 0
    %463 = vmatprep.subr.bf16.mxu0 0
    %464 = vmatpush2.bf16.msra.mxu0 0
    %465 = vmatprep.subr.bf16.mxu0 0
    %466 = vmatpush2.bf16.msra.mxu0 0
    %467 = vmatprep.subr.bf16.mxu0 0
    %468 = vmatpush2.bf16.msra.mxu0 0
    %469 = vmatprep.subr.bf16.mxu0 0
    %470 = vmatpush2.bf16.msra.mxu0 0
    %471 = vmatprep.mubr.bf16.mxu0 0
    %472 = vmatmul.mubr.bf16.gmra.mxu0 %v219
    %v473 = vpop.f32.mrf.mxu0
    %v474 = vadd.f32 %v266, %v473
    %v475 = vpop.f32.mrf.mxu0
    %v476 = vpop.f32.mrf.mxu0
    %v477 = vpop.f32.mrf.mxu0
    %478 = vdwg.mxu0
    %v479 = vpack.c.bf16 %v220, %v220
    %v480 = vld [vmem:[#allocation11] sm:$0xff]
    %v481 = vld [vmem:[#allocation11 + $0x8] sm:$0xf]
    %v482 = vld [vmem:[#allocation11 + $0xc] sm:$0xff]
    %v483 = vld [vmem:[#allocation11 + $0x14] sm:$0xf]
    %v484 = vld [vmem:[#allocation11 + $0x18] sm:$0xff]
    %v485 = vld [vmem:[#allocation11 + $0x20] sm:$0xf]
    %v486 = vld [vmem:[#allocation11 + $0x24] sm:$0xff]
    %v487 = vld [vmem:[#allocation11 + $0x2c] sm:$0xf]
    %v488 = vld [vmem:[#allocation11 + $0x30] sm:$0xff]
    %v489 = vld [vmem:[#allocation11 + $0x38] sm:$0xf]
    %v490 = vld [vmem:[#allocation11 + $0x3c] sm:$0xff]
    %v491 = vld [vmem:[#allocation11 + $0x44] sm:$0xf]
    %v492 = vld [vmem:[#allocation11 + $0x48] sm:$0xff]
    %v493 = vld [vmem:[#allocation11 + $0x50] sm:$0xf]
    %v494 = vld [vmem:[#allocation11 + $0x54] sm:$0xff]
    %v495 = vld [vmem:[#allocation11 + $0x5c] sm:$0xf]
    %v496 = vld [vmem:[#allocation11 + $0x60] sm:$0xff]
    %v497 = vld [vmem:[#allocation11 + $0x68] sm:$0xf]
    %v498 = vld [vmem:[#allocation11 + $0x6c] sm:$0xff]
    %v499 = vld [vmem:[#allocation11 + $0x74] sm:$0xf]
    %v500 = vld [vmem:[#allocation11 + $0x78] sm:$0xff]
    %v501 = vld [vmem:[#allocation11 + $0x80] sm:$0xf]
    %v502 = vld [vmem:[#allocation11 + $0x84] sm:$0xff]
    %v503 = vld [vmem:[#allocation11 + $0x8c] sm:$0xf]
    %v504 = vld [vmem:[#allocation11 + $0x90] sm:$0xff]
    %v505 = vld [vmem:[#allocation11 + $0x98] sm:$0xf]
    %v506 = vld [vmem:[#allocation11 + $0x9c] sm:$0xff]
    %v507 = vld [vmem:[#allocation11 + $0xa4] sm:$0xf]
    %v508 = vld [vmem:[#allocation11 + $0xa8] sm:$0xff]
    %v509 = vld [vmem:[#allocation11 + $0xb0] sm:$0xf]
    %v510 = vld [vmem:[#allocation11 + $0xb4] sm:$0xff]
    %v511 = vld [vmem:[#allocation11 + $0xbc] sm:$0xf]
    %v512 = vld [vmem:[%s6] sm:$0x7]
    %v514 = vlaneseq
    %v515 = vshrl.u32 %v514, 7
    %v516 = vsub.s32 0, %v515
    %v517 = vrot.slane %v512, %v516
    %v518 = vlaneseq
    %v519 = vshrl.u32 %v518, 7
    %v520 = vsub.s32 1, %v519
    %v521 = vrot.slane %v512, %v520
    %v522 = vlaneseq
    %v523 = vshrl.u32 %v522, 7
    %v524 = vsub.s32 2, %v523
    %v525 = vrot.slane %v512, %v524
    %v561 = vunpack.c.l.b16 %v480
    %v562 = vunpack.c.h.b16 %v480
    %v563 = vunpack.c.l.b16 %v481
    %v564 = vunpack.c.l.b16 %v482
    %v565 = vunpack.c.h.b16 %v482
    %v566 = vunpack.c.l.b16 %v483
    %v567 = vunpack.c.l.b16 %v484
    %v568 = vunpack.c.h.b16 %v484
    %v569 = vunpack.c.l.b16 %v485
    %v570 = vunpack.c.l.b16 %v486
    %v571 = vunpack.c.h.b16 %v486
    %v572 = vunpack.c.l.b16 %v487
    %v573 = vunpack.c.l.b16 %v488
    %v574 = vunpack.c.h.b16 %v488
    %v575 = vunpack.c.l.b16 %v489
    %v576 = vunpack.c.l.b16 %v490
    %v577 = vunpack.c.h.b16 %v490
    %v578 = vunpack.c.l.b16 %v491
    %v579 = vunpack.c.l.b16 %v492
    %v580 = vunpack.c.h.b16 %v492
    %v581 = vunpack.c.l.b16 %v493
    %v582 = vunpack.c.l.b16 %v494
    %v583 = vunpack.c.h.b16 %v494
    %v584 = vunpack.c.l.b16 %v495
    %v585 = vunpack.c.l.b16 %v496
    %v586 = vunpack.c.h.b16 %v496
    %v587 = vunpack.c.l.b16 %v497
    %v588 = vunpack.c.l.b16 %v498
    %v589 = vunpack.c.h.b16 %v498
    %v590 = vunpack.c.l.b16 %v499
    %v591 = vunpack.c.l.b16 %v500
    %v592 = vunpack.c.h.b16 %v500
    %v593 = vunpack.c.l.b16 %v501
    %v594 = vunpack.c.l.b16 %v502
    %v595 = vunpack.c.h.b16 %v502
    %v596 = vunpack.c.l.b16 %v503
    %v597 = vunpack.c.l.b16 %v504
    %v598 = vunpack.c.h.b16 %v504
    %v599 = vunpack.c.l.b16 %v505
    %v600 = vunpack.c.l.b16 %v506
    %v601 = vunpack.c.h.b16 %v506
    %v602 = vunpack.c.l.b16 %v507
    %v603 = vunpack.c.l.b16 %v508
    %v604 = vunpack.c.h.b16 %v508
    %v605 = vunpack.c.l.b16 %v509
    %v606 = vunpack.c.l.b16 %v510
    %v607 = vunpack.c.h.b16 %v510
    %v608 = vunpack.c.l.b16 %v511
    %v609 = vpack.c.b16 %v564, %v561
    %v610 = vpack.c.b16 %v565, %v562
    %v611 = vpack.c.b16 %v566, %v563
    %v612 = vpack.c.b16 %v570, %v567
    %v613 = vpack.c.b16 %v571, %v568
    %v614 = vpack.c.b16 %v572, %v569
    %v615 = vpack.c.b16 %v576, %v573
    %v616 = vpack.c.b16 %v577, %v574
    %v617 = vpack.c.b16 %v578, %v575
    %v618 = vpack.c.b16 %v582, %v579
    %v619 = vpack.c.b16 %v583, %v580
    %v620 = vpack.c.b16 %v584, %v581
    %v621 = vpack.c.b16 %v588, %v585
    %v622 = vpack.c.b16 %v589, %v586
    %v623 = vpack.c.b16 %v590, %v587
    %v624 = vpack.c.b16 %v594, %v591
    %v625 = vpack.c.b16 %v595, %v592
    %v626 = vpack.c.b16 %v596, %v593
    %v627 = vpack.c.b16 %v600, %v597
    %v628 = vpack.c.b16 %v601, %v598
    %v629 = vpack.c.b16 %v602, %v599
    %v630 = vpack.c.b16 %v606, %v603
    %v631 = vpack.c.b16 %v607, %v604
    %v632 = vpack.c.b16 %v608, %v605
    %657 = vmatprep.subr.bf16.mxu0 %v631
    %658 = vmatpush1.bf16.msra.mxu0 %v630
    %659 = vmatprep.subr.bf16.mxu0 %v628
    %660 = vmatpush1.bf16.msra.mxu0 %v627
    %661 = vmatprep.subr.bf16.mxu0 %v625
    %662 = vmatpush1.bf16.msra.mxu0 %v624
    %663 = vmatprep.subr.bf16.mxu0 %v622
    %664 = vmatpush1.bf16.msra.mxu0 %v621
    %665 = vmatprep.subr.bf16.mxu0 %v619
    %666 = vmatpush1.bf16.msra.mxu0 %v618
    %667 = vmatprep.subr.bf16.mxu0 %v616
    %668 = vmatpush1.bf16.msra.mxu0 %v615
    %669 = vmatprep.subr.bf16.mxu0 %v613
    %670 = vmatpush1.bf16.msra.mxu0 %v612
    %671 = vmatprep.subr.bf16.mxu0 %v610
    %672 = vmatpush1.bf16.msra.mxu0 %v609
    %673 = vmatprep.subr.bf16.mxu0 0
    %674 = vmatpush2.bf16.msra.mxu0 0
    %675 = vmatprep.subr.bf16.mxu0 0
    %676 = vmatpush2.bf16.msra.mxu0 0
    %677 = vmatprep.subr.bf16.mxu0 0
    %678 = vmatpush2.bf16.msra.mxu0 0
    %679 = vmatprep.subr.bf16.mxu0 0
    %680 = vmatpush2.bf16.msra.mxu0 0
    %681 = vmatprep.subr.bf16.mxu0 0
    %682 = vmatpush2.bf16.msra.mxu0 0
    %683 = vmatprep.subr.bf16.mxu0 0
    %684 = vmatpush2.bf16.msra.mxu0 0
    %685 = vmatprep.subr.bf16.mxu0 0
    %686 = vmatpush2.bf16.msra.mxu0 0
    %687 = vmatprep.subr.bf16.mxu0 0
    %688 = vmatpush2.bf16.msra.mxu0 0
    %689 = vmatprep.mubr.bf16.mxu0 0
    %690 = vmatmul.mubr.bf16.gmra.mxu0 %v479
    %v691 = vpop.f32.mrf.mxu0
    %v692 = vadd.f32 %v517, %v691
    %v693 = vpop.f32.mrf.mxu0
    %v694 = vadd.f32 %v521, %v693
    %v695 = vpop.f32.mrf.mxu0
    %v696 = vpop.f32.mrf.mxu0
    %697 = vdwg.mxu0
    %698 = vmatprep.subr.bf16.mxu0 0
    %699 = vmatpush1.bf16.msra.mxu0 %v632
    %700 = vmatprep.subr.bf16.mxu0 0
    %701 = vmatpush1.bf16.msra.mxu0 %v629
    %702 = vmatprep.subr.bf16.mxu0 0
    %703 = vmatpush1.bf16.msra.mxu0 %v626
    %704 = vmatprep.subr.bf16.mxu0 0
    %705 = vmatpush1.bf16.msra.mxu0 %v623
    %706 = vmatprep.subr.bf16.mxu0 0
    %707 = vmatpush1.bf16.msra.mxu0 %v620
    %708 = vmatprep.subr.bf16.mxu0 0
    %709 = vmatpush1.bf16.msra.mxu0 %v617
    %710 = vmatprep.subr.bf16.mxu0 0
    %711 = vmatpush1.bf16.msra.mxu0 %v614
    %712 = vmatprep.subr.bf16.mxu0 0
    %713 = vmatpush1.bf16.msra.mxu0 %v611
    %714 = vmatprep.subr.bf16.mxu0 0
    %715 = vmatpush2.bf16.msra.mxu0 0
    %716 = vmatprep.subr.bf16.mxu0 0
    %717 = vmatpush2.bf16.msra.mxu0 0
    %718 = vmatprep.subr.bf16.mxu0 0
    %719 = vmatpush2.bf16.msra.mxu0 0
    %720 = vmatprep.subr.bf16.mxu0 0
    %721 = vmatpush2.bf16.msra.mxu0 0
    %722 = vmatprep.subr.bf16.mxu0 0
    %723 = vmatpush2.bf16.msra.mxu0 0
    %724 = vmatprep.subr.bf16.mxu0 0
    %725 = vmatpush2.bf16.msra.mxu0 0
    %726 = vmatprep.subr.bf16.mxu0 0
    %727 = vmatpush2.bf16.msra.mxu0 0
    %728 = vmatprep.subr.bf16.mxu0 0
    %729 = vmatpush2.bf16.msra.mxu0 0
    %730 = vmatprep.mubr.bf16.mxu0 0
    %731 = vmatmul.mubr.bf16.gmra.mxu0 %v479
    %v732 = vpop.f32.mrf.mxu0
    %v733 = vadd.f32 %v525, %v732
    %v734 = vpop.f32.mrf.mxu0
    %v735 = vpop.f32.mrf.mxu0
    %v736 = vpop.f32.mrf.mxu0
    %737 = vdwg.mxu0
    %v738 = vadd.f32 %v433, %v692
    %v739 = vxor.u32 %v738, 2147483648
    %v740 = vmul.f32 %v739, 1.442695
    %v741 = vpow.pop %v740
    %v742 = vadd.f32 %v741, 1.0
    %v743 = vrcp.pop %v742
    %v744 = vmul.f32 1.0, %v743
    %v745 = vadd.f32 %v435, %v694
    %v746 = vxor.u32 %v745, 2147483648
    %v747 = vmul.f32 %v746, 1.442695
    %v748 = vpow.pop %v747
    %v749 = vadd.f32 %v748, 1.0
    %v750 = vrcp.pop %v749
    %v751 = vmul.f32 1.0, %v750
    %v752 = vmul.f32 %v744, %v733
    %v753 = vadd.f32 %v474, %v752
    %v754 = vtanh.pop %v753
    %v755 = vsub.f32 1.0, %v751
    %v756 = vmul.f32 %v755, %v754
    %v757 = vmul.f32 %v751, %v220
    %v758 = vadd.f32 %v756, %v757
    %759 = vst [vmem:[#allocation12] sm:$0xff] %v758
    // Predicated region
    $region66: #{tpu_custom_call.1} parent=1 // pred_check
      _
    $region67: #{tpu_custom_call.1} parent=1 // pred_check_branch
      %761 = sbr.rel (0) target = $region69
    $region68: #{tpu_custom_call.1} parent=1 // pred_region
      %s763 = ssub.s32 128, 128
      %764 = vsyncadd [#allocation8], %s763
      %s766 = sshll.u32 [#allocation12], 4
      %s767 = int_to_ptr.vmem [resolvable:$true] %s766
      %769 = dma.vmem_to_hbm [thread:$0]  %s767, 128, %s7, [#allocation8]
    $region69: #{tpu_custom_call.1} parent=1 // pred_fallthru
      _
    // Predicated region
    $region70: #{tpu_custom_call.1} parent=1 // pred_check
      _
    $region71: #{tpu_custom_call.1} parent=1 // pred_check_branch
      %771 = sbr.rel (0) target = $region73
    $region72: #{tpu_custom_call.1} parent=1 // pred_region
      %772 = dma.done [#allocation8], 128
    $region73: #{tpu_custom_call.1} parent=1 // pred_fallthru
      _
    %773 = vsyncpa [#allocation7], 1
    %774 = vsyncpa [#allocation10], 1
    %775 = vsyncpa [#allocation8], 1
  %776 = vsyncmov [#allocation3]
  %s777 = vpop.sfrf %776
  %p778 = scmp.eq.s32.totalorder %s777, 0
  %p779 = pneg %p778
  %781 = shalt.err (%p779)
  %s782 = scalar_lea.sflag [#allocation3], 1
  %783 = vsyncmov %s782
  %s784 = vpop.sfrf %783
  %p785 = scmp.eq.s32.totalorder %s784, 0
  %p786 = pneg %p785
  %788 = shalt.err (%p786)
  %s789 = scalar_lea.sflag [#allocation3], 2
  %790 = vsyncmov %s789
  %s791 = vpop.sfrf %790
  %p792 = scmp.eq.s32.totalorder %s791, 0
  %p793 = pneg %p792
  %795 = shalt.err (%p793)
  %s796 = scalar_lea.sflag [#allocation3], 3
  %797 = vsyncmov %s796
  %s798 = vpop.sfrf %797
  %p799 = scmp.eq.s32.totalorder %s798, 0
  %p800 = pneg %p799
  %802 = shalt.err (%p800)
  %s803 = scalar_lea.sflag [#allocation3], 4
  %804 = vsyncmov %s803
  %s805 = vpop.sfrf %804
  %p806 = scmp.eq.s32.totalorder %s805, 0
  %p807 = pneg %p806
  %809 = shalt.err (%p807)
  %s810 = scalar_lea.sflag [#allocation3], 5
  %811 = vsyncmov %s810
  %s812 = vpop.sfrf %811
  %p813 = scmp.eq.s32.totalorder %s812, 0
  %p814 = pneg %p813
  %816 = shalt.err (%p814)
  %s817 = scalar_lea.sflag [#allocation3], 6
  %818 = vsyncmov %s817
  %s819 = vpop.sfrf %818
  %p820 = scmp.eq.s32.totalorder %s819, 0
  %p821 = pneg %p820
  %823 = shalt.err (%p821)
  %s824 = scalar_lea.sflag [#allocation3], 7
  %825 = vsyncmov %s824
  %s826 = vpop.sfrf %825
  %p827 = scmp.eq.s32.totalorder %s826, 0
  %p828 = pneg %p827
  %830 = shalt.err (%p828)

</llo_original>
